<compile_context>
chip_gen: v7x
topology: tpu7x:2x2x1
jax: 0.10.0
libtpu: 0.0.40
codegen_flags: <defaults>
</compile_context>

<pallas_src>
import functools

import jax
import jax.numpy as jnp
from jax.experimental import pallas as pl
from jax.experimental.pallas import tpu as pltpu


def _round_up(x, m):
    return ((x + m - 1) // m) * m


def _focal_loss_kernel(logits_ref, targets_ref, alpha_ref, out_ref, *,
                       gamma, tile_n, n_total):
    i = pl.program_id(0)
    x = logits_ref[...].astype(jnp.float32)          # (TILE_N, C_pad)
    t = targets_ref[...]                             # (TILE_N, 1) int32
    a = alpha_ref[...].astype(jnp.float32)           # (1, C_pad)
    tn, c = x.shape

    # --- log-sum-exp over the class axis (no full softmax materialized) ---
    m = jnp.max(x, axis=1, keepdims=True)            # (TILE_N, 1)
    denom = jnp.sum(jnp.exp(x - m), axis=1, keepdims=True)
    lse = m + jnp.log(denom)                         # (TILE_N, 1)

    # --- one-hot mask from iota/compare (scatter_ equivalent) ---
    cols = jax.lax.broadcasted_iota(jnp.int32, (tn, c), 1)
    mask = (cols == t).astype(jnp.float32)           # (TILE_N, C_pad)

    # gather the target logit and alpha via masked reductions
    x_t = jnp.sum(x * mask, axis=1, keepdims=True)       # (TILE_N, 1)
    alpha_t = jnp.sum(mask * a, axis=1, keepdims=True)   # (TILE_N, 1)

    log_p = x_t - lse                                # exact log softmax[target]
    probs = jnp.exp(log_p)
    one_m = 1.0 - probs
    if gamma == 2.0:                                 # static branch (trace time)
        focal = one_m * one_m
    elif gamma == 1.0:
        focal = one_m
    elif gamma == 0.0:
        focal = jnp.ones_like(one_m)
    else:
        focal = jnp.power(one_m, gamma)

    batch_loss = -alpha_t * focal * log_p            # (TILE_N, 1)

    # mask out rows that are only batch padding
    rows = i * tile_n + jax.lax.broadcasted_iota(jnp.int32, (tn, 1), 0)
    valid = (rows < n_total).astype(jnp.float32)

    out_ref[0, 0] = jnp.sum(batch_loss * valid)      # per-tile partial sum


def focal_loss(logits, targets, alpha, *, gamma=2.0, size_average=True,
               tile_n=None):
    """logits: (N, C) float, targets: (N,) int, alpha: (C, 1) or (C,) float."""
    N, C = logits.shape
    C_pad = _round_up(C, 128)

    if tile_n is None:
        # keep double-buffered logits tiles under ~8 MiB (safe on every gen,
        # including v5e's 16 MiB scoped-VMEM default and v7x's 64 MiB physical)
        budget_rows = (8 * 1024 * 1024) // (2 * C_pad * 4)
        tile_n = min(1024, budget_rows, _round_up(N, 8))
    tile_n = max(8, (int(tile_n) // 8) * 8)
    N_pad = _round_up(N, tile_n)
    num_tiles = N_pad // tile_n

    # Pad class axis with a large negative (exp -> 0) and batch axis with zeros.
    x = logits
    if C_pad != C:
        neg_big = jnp.asarray(-1e30, dtype=logits.dtype)
        x = jnp.pad(x, ((0, 0), (0, C_pad - C)), constant_values=neg_big)
    if N_pad != N:
        x = jnp.pad(x, ((0, N_pad - N), (0, 0)))

    t2 = targets.reshape(N, 1).astype(jnp.int32)
    if N_pad != N:
        t2 = jnp.pad(t2, ((0, N_pad - N), (0, 0)))

    a2 = alpha.reshape(1, C).astype(jnp.float32)
    if C_pad != C:
        a2 = jnp.pad(a2, ((0, 0), (0, C_pad - C)))

    kernel = functools.partial(_focal_loss_kernel, gamma=float(gamma),
                               tile_n=tile_n, n_total=N)

    partials = pl.pallas_call(
        kernel,
        out_shape=jax.ShapeDtypeStruct((num_tiles, 1), jnp.float32),
        grid=(num_tiles,),
        in_specs=[
            pl.BlockSpec((tile_n, C_pad), lambda i: (i, 0)),   # logits tile
            pl.BlockSpec((tile_n, 1), lambda i: (i, 0)),       # targets tile
            pl.BlockSpec((1, C_pad), lambda i: (0, 0)),        # alpha (resident)
        ],
        out_specs=pl.BlockSpec((1, 1), lambda i: (i, 0),
                               memory_space=pltpu.MemorySpace.SMEM),
        compiler_params=pltpu.CompilerParams(
            dimension_semantics=("parallel",),
            vmem_limit_bytes=32 * 1024 * 1024),
    )(x, t2, a2)

    total = jnp.sum(partials)
    if size_average:
        return total / jnp.float32(N)
    return total


def _focal_loss_ref(logits, targets, alpha, *, gamma=2.0, size_average=True):
    x = logits.astype(jnp.float32)
    logp = jax.nn.log_softmax(x, axis=1)
    lp_t = jnp.take_along_axis(logp, targets.reshape(-1, 1), axis=1)
    p_t = jnp.exp(lp_t)
    a = alpha.reshape(-1)[targets].reshape(-1, 1)
    bl = -a * jnp.power(1.0 - p_t, gamma) * lp_t
    return jnp.mean(bl) if size_average else jnp.sum(bl)


if __name__ == "__main__":
    key = jax.random.PRNGKey(0)
    k1, k2, k3, k4 = jax.random.split(key, 4)

    # Case 1: toy shapes matching the module (batch=8, class_num=8), mean.
    N, C = 8, 8
    logits = jax.random.normal(k1, (N, C), dtype=jnp.float32)
    targets = jax.random.randint(k2, (N,), 0, C, dtype=jnp.int32)
    alpha = (0.5 + 0.05 * jnp.arange(C, dtype=jnp.float32)).reshape(C, 1)

    loss = jax.block_until_ready(
        focal_loss(logits, targets, alpha, gamma=2.0, size_average=True))
    ref = _focal_loss_ref(logits, targets, alpha, gamma=2.0, size_average=True)
    assert jnp.allclose(loss, ref, rtol=1e-5, atol=1e-6), (loss, ref)

    # Case 2: exercise the tiled / padded path (grid > 1, ragged N and C), sum.
    N2, C2 = 300, 40
    logits2 = jax.random.normal(k3, (N2, C2), dtype=jnp.float32)
    targets2 = jax.random.randint(k4, (N2,), 0, C2, dtype=jnp.int32)
    alpha2 = jnp.ones((C2, 1), dtype=jnp.float32)
    loss2 = jax.block_until_ready(
        focal_loss(logits2, targets2, alpha2, gamma=2.0, size_average=False,
                   tile_n=128))
    ref2 = _focal_loss_ref(logits2, targets2, alpha2, gamma=2.0,
                           size_average=False)
    assert jnp.allclose(loss2, ref2, rtol=2e-5, atol=1e-4), (loss2, ref2)

    print("KERNEL_OK")
</pallas_src>

<mosaic_0001>
module attributes {stable_mosaic.version = 11 : i64} {
  func.func @_focal_loss_kernel(%arg0: i32, %arg1: memref<8x128xf32, #tpu.memory_space<vmem>>, %arg2: memref<8x1xi32, #tpu.memory_space<vmem>>, %arg3: memref<1x128xf32, #tpu.memory_space<vmem>>, %arg4: memref<1x1xf32, #tpu.memory_space<smem>>) attributes {dimension_semantics = [#tpu.dimension_semantics<parallel>], iteration_bounds = array<i64: 1>, scalar_prefetch = 0 : i64, scratch_operands = 0 : i64, tpu.core_type = #tpu.core_type<tc>, window_params = [{transform_indices = @transform_0, window_bounds = array<i64: 8, 128>}, {transform_indices = @transform_1, window_bounds = array<i64: 8, 1>}, {pipeline_mode = #tpu.pipeline_mode<synchronous>, transform_indices = @transform_2, window_bounds = array<i64: 1, 128>}, {transform_indices = @transform_3, window_bounds = array<i64: 1, 1>}]} {
    %c0 = arith.constant 0 : index
    %c0_0 = arith.constant 0 : index
    %0 = vector.load %arg1[%c0, %c0_0] : memref<8x128xf32, #tpu.memory_space<vmem>>, vector<8x128xf32>
    %c0_1 = arith.constant 0 : index
    %c0_2 = arith.constant 0 : index
    %1 = vector.load %arg2[%c0_1, %c0_2] : memref<8x1xi32, #tpu.memory_space<vmem>>, vector<8x1xi32>
    %c0_3 = arith.constant 0 : index
    %c0_4 = arith.constant 0 : index
    %2 = vector.load %arg3[%c0_3, %c0_4] : memref<1x128xf32, #tpu.memory_space<vmem>>, vector<1x128xf32>
    %cst = arith.constant dense<0xFF800000> : vector<8xf32>
    %3 = vector.multi_reduction <maximumf>, %0, %cst [1] : vector<8x128xf32> to vector<8xf32>
    %4 = vector.shape_cast %3 : vector<8xf32> to vector<8x1xf32>
    %5 = vector.broadcast %4 : vector<8x1xf32> to vector<8x128xf32>
    %6 = arith.subf %0, %5 : vector<8x128xf32>
    %7 = math.exp %6 : vector<8x128xf32>
    %cst_5 = arith.constant dense<0.000000e+00> : vector<8xf32>
    %8 = vector.multi_reduction <add>, %7, %cst_5 [1] : vector<8x128xf32> to vector<8xf32>
    %9 = vector.shape_cast %8 : vector<8xf32> to vector<8x1xf32>
    %10 = math.log %9 : vector<8x1xf32>
    %11 = arith.addf %4, %10 : vector<8x1xf32>
    %12 = tpu.iota {dimensions = array<i32: 1>} : vector<8x128xi32>
    %13 = vector.broadcast %1 : vector<8x1xi32> to vector<8x128xi32>
    %14 = arith.cmpi eq, %12, %13 : vector<8x128xi32>
    %15 = arith.extui %14 : vector<8x128xi1> to vector<8x128xi32>
    %16 = arith.sitofp %15 : vector<8x128xi32> to vector<8x128xf32>
    %17 = arith.mulf %0, %16 : vector<8x128xf32>
    %cst_6 = arith.constant dense<0.000000e+00> : vector<8xf32>
    %18 = vector.multi_reduction <add>, %17, %cst_6 [1] : vector<8x128xf32> to vector<8xf32>
    %19 = vector.shape_cast %18 : vector<8xf32> to vector<8x1xf32>
    %20 = vector.broadcast %2 : vector<1x128xf32> to vector<8x128xf32>
    %21 = arith.mulf %16, %20 : vector<8x128xf32>
    %cst_7 = arith.constant dense<0.000000e+00> : vector<8xf32>
    %22 = vector.multi_reduction <add>, %21, %cst_7 [1] : vector<8x128xf32> to vector<8xf32>
    %23 = vector.shape_cast %22 : vector<8xf32> to vector<8x1xf32>
    %24 = arith.subf %19, %11 : vector<8x1xf32>
    %25 = math.exp %24 : vector<8x1xf32>
    %cst_8 = arith.constant 1.000000e+00 : f32
    %26 = vector.broadcast %cst_8 : f32 to vector<8x1xf32>
    %27 = arith.subf %26, %25 : vector<8x1xf32>
    %28 = arith.mulf %27, %27 : vector<8x1xf32>
    %cst_9 = arith.constant 0.000000e+00 : f32
    %29 = vector.broadcast %cst_9 : f32 to vector<8x1xf32>
    %30 = arith.subf %29, %23 : vector<8x1xf32>
    %31 = arith.mulf %30, %28 : vector<8x1xf32>
    %32 = arith.mulf %31, %24 : vector<8x1xf32>
    %c8_i32 = arith.constant 8 : i32
    %33 = arith.muli %arg0, %c8_i32 : i32
    %34 = tpu.iota {dimensions = array<i32: 0>} : vector<8x1xi32>
    %35 = vector.broadcast %33 : i32 to vector<8x1xi32>
    %36 = arith.addi %35, %34 : vector<8x1xi32>
    %c8_i32_10 = arith.constant 8 : i32
    %37 = vector.broadcast %c8_i32_10 : i32 to vector<8x1xi32>
    %38 = arith.cmpi slt, %36, %37 : vector<8x1xi32>
    %39 = arith.extui %38 : vector<8x1xi1> to vector<8x1xi32>
    %40 = arith.sitofp %39 : vector<8x1xi32> to vector<8x1xf32>
    %41 = arith.mulf %32, %40 : vector<8x1xf32>
    %42 = vector.shape_cast %41 : vector<8x1xf32> to vector<1x8x1xf32>
    %cst_11 = arith.constant dense<0.000000e+00> : vector<1xf32>
    %43 = vector.multi_reduction <add>, %42, %cst_11 [1, 2] : vector<1x8x1xf32> to vector<1xf32>
    %44 = vector.shape_cast %43 : vector<1xf32> to vector<1x1x1xf32>
    %45 = vector.extract %44[0, 0, 0] : f32 from vector<1x1x1xf32>
    %c0_12 = arith.constant 0 : index
    %c0_13 = arith.constant 0 : index
    %46 = memref.load %arg4[%c0_12, %c0_13] : memref<1x1xf32, #tpu.memory_space<smem>>
    memref.store %45, %arg4[%c0_12, %c0_13] : memref<1x1xf32, #tpu.memory_space<smem>>
    return
  }
  func.func @transform_0(%arg0: i32) -> (i32, i32) {
    %c0_i32 = arith.constant 0 : i32
    %c0_i32_0 = arith.constant 0 : i32
    return %arg0, %c0_i32 : i32, i32
  }
  func.func @transform_1(%arg0: i32) -> (i32, i32) {
    %c0_i32 = arith.constant 0 : i32
    %c0_i32_0 = arith.constant 0 : i32
    return %arg0, %c0_i32 : i32, i32
  }
  func.func @transform_2(%arg0: i32) -> (i32, i32) {
    %c0_i32 = arith.constant 0 : i32
    %c0_i32_0 = arith.constant 0 : i32
    %c0_i32_1 = arith.constant 0 : i32
    return %c0_i32, %c0_i32_0 : i32, i32
  }
  func.func @transform_3(%arg0: i32) -> (i32, i32) {
    %c0_i32 = arith.constant 0 : i32
    %c0_i32_0 = arith.constant 0 : i32
    return %arg0, %c0_i32 : i32, i32
  }
}

</mosaic_0001>

<llo_original>
// kernel: tpu_custom_call.1
$region0: #{tpu_custom_call.1}
  #allocation0 [shape = 'u32[]', space=smem, size = 0x4, offset = 0x4, fixed_abs, tag = 'smem constant byte address 0x4 - core index']
  #allocation1 [shape = 'u32[144,128]{1,0:T(1,128)}', space=vmem, size = 0x12000, scoped, tag = 'internal scratch']
  %s0 = inlined_call_operand.vmem [shape: f32[8,128], index: 0, kind: input, shape index: {}]
  %s1 = inlined_call_operand.vmem [shape: s32[8,1], index: 1, kind: input, shape index: {}]
  %s2 = inlined_call_operand.vmem [shape: f32[1,128], index: 2, kind: input, shape index: {}]
  %s3 = inlined_call_operand.hbm [shape: f32[1,1], index: 3, kind: output, shape index: {}]
  %s4 = sld [smem:[#allocation0]]
  $region22: #{tpu_custom_call.1} parent=0
    _
  %s6 = ssub.s32 1, %s4
  %s7 = scalar_select 0, %s6, %s4
  $region1: #{tpu_custom_call.1} parent=0
    #allocation2 [shape = 'u8[512]{0}', space=smem, size = 0x200, scoped, tag = 'output window, operand 0, single buffered']
    #allocation3 [shape = 's32[1]{0}', space=sflag, size = 0x4, scoped, tag = 'scoped memory for tpu_custom_call.1']
    %8 = vsyncpa [#allocation3], 0
    // Predicated region
    $region2: #{tpu_custom_call.1} parent=1 // pred_check
      _
    $region3: #{tpu_custom_call.1} parent=1 // pred_check_branch
      %10 = sbr.rel (0) target = $region5
    $region4: #{tpu_custom_call.1} parent=1 // pred_region
      _
    $region5: #{tpu_custom_call.1} parent=1 // pred_fallthru
      _
    // Predicated region
    $region6: #{tpu_custom_call.1} parent=1 // pred_check
      _
    $region7: #{tpu_custom_call.1} parent=1 // pred_check_branch
      %12 = sbr.rel (0) target = $region9
    $region8: #{tpu_custom_call.1} parent=1 // pred_region
      _
    $region9: #{tpu_custom_call.1} parent=1 // pred_fallthru
      _
    // Predicated region
    $region10: #{tpu_custom_call.1} parent=1 // pred_check
      _
    $region11: #{tpu_custom_call.1} parent=1 // pred_check_branch
      %14 = sbr.rel (0) target = $region13
    $region12: #{tpu_custom_call.1} parent=1 // pred_region
      _
    $region13: #{tpu_custom_call.1} parent=1 // pred_fallthru
      _
    %v15 = vld [vmem:[%s0] sm:$0xff]
    %v16 = vld [vmem:[%s1] sm:$0xff]
    %v17 = vld [vmem:[%s2] sm:$0x1]
    %18 = vmax.xlane.f32.xlu0 %v15
    %v19 = vpop.xlane.xlu0 %18
    %v20 = vsub.f32 %v15, %v19
    %v21 = vmul.f32 %v20, 1.442695
    %v22 = vpow.pop %v21
    %23 = vadd.xlane.f32.xlu0 %v22
    %v24 = vpop.xlane.xlu0 %23
    %v25 = vlog2.pop %v24
    %v26 = vmul.f32 %v25, 0.6931472
    %v27 = vadd.f32 %v19, %v26
    %v28 = vlaneseq
    %v29 = vand.u32 %v28, 127
    %30 = vset.pattern.permute.xlu0 0
    %31 = vperm.xlu0 %30, %v16
    %v32 = vpop.permute.xlu0 %31
    %vm33 = vcmp.eq.s32.totalorder %v29, %v32
    %v34 = vsel %vm33, 1, 0
    %v35 = vcvt.s32.f32 %v34
    %v36 = vmul.f32 %v15, %v35
    %37 = vadd.xlane.f32.xlu0 %v36
    %v38 = vpop.xlane.xlu0 %37
    %v40 = vlaneseq
    %v41 = vshrl.u32 %v40, 7
    %v42 = vsub.s32 0, %v41
    %v43 = vrot.slane %v17, %v42
    %v45 = vmul.f32 %v35, %v43
    %46 = vadd.xlane.f32.xlu0 %v45
    %v47 = vpop.xlane.xlu0 %46
    %v48 = vsub.f32 %v38, %v27
    %v49 = vmul.f32 %v48, 1.442695
    %v50 = vpow.pop %v49
    %v51 = vsub.f32 1.0, %v50
    %v52 = vmul.f32 %v51, %v51
    %v53 = vsub.f32 0.0, %v47
    %v54 = vmul.f32 %v53, %v52
    %v55 = vmul.f32 %v54, %v48
    %s56 = smul.u32 0, 8
    %v57 = vlaneseq
    %v58 = vshrl.u32 %v57, 7
    %v59 = vstv %s56
    %v60 = vadd.s32 %v59, %v58
    %vm61 = vcmp.lt.s32.totalorder %v60, 8
    %v62 = vsel %vm61, 1, 0
    %v63 = vcvt.s32.f32 %v62
    %v64 = vmul.f32 %v55, %v63
    %vm65 = vcmask 7168
    %v66 = vsel %vm65, %v64, 0.0
    %67 = vadd.xlane.f32.xlu0 %v66
    %v68 = vpop.xlane.xlu0 %67
    %v69 = vrot.slane %v68, 4
    %v70 = vadd.f32 %v68, %v69
    %v71 = vrot.slane %v70, 2
    %v72 = vadd.f32 %v70, %v71
    %v73 = vrot.slane %v72, 1
    %v74 = vadd.f32 %v72, %v73
    %s75 = vtos %v74
    %s76 = scalar_lea.smem [#allocation2], 0
    %77 = sst [smem:[%s76]] %s75
    // Predicated region
    $region14: #{tpu_custom_call.1} parent=1 // pred_check
      _
    $region15: #{tpu_custom_call.1} parent=1 // pred_check_branch
      %79 = sbr.rel (0) target = $region17
    $region16: #{tpu_custom_call.1} parent=1 // pred_region
      %s81 = ssub.s32 16, 16
      %82 = vsyncadd [#allocation3], %s81
      %85 = dma.smem_to_hbm [#allocation2], 16, %s3, [#allocation3]
    $region17: #{tpu_custom_call.1} parent=1 // pred_fallthru
      _
    // Predicated region
    $region18: #{tpu_custom_call.1} parent=1 // pred_check
      _
    $region19: #{tpu_custom_call.1} parent=1 // pred_check_branch
      %87 = sbr.rel (0) target = $region21
    $region20: #{tpu_custom_call.1} parent=1 // pred_region
      %88 = dma.done [#allocation3], 16
    $region21: #{tpu_custom_call.1} parent=1 // pred_fallthru
      _
    %89 = sfence
    %90 = vsyncpa [#allocation3], 1

</llo_original>
